<compile_context>
chip_gen: v7x
topology: tpu7x:2x2x1
jax: 0.10.0
libtpu: 0.0.40
codegen_flags: <defaults>
</compile_context>

<pallas_src>
import functools

import jax
import jax.numpy as jnp
import numpy as np
from jax.experimental import pallas as pl
from jax.experimental.pallas import tpu as pltpu


def _round_up(n, m):
    return ((n + m - 1) // m) * m


# ----------------------------- Pallas kernels ---------------------------------------- #

def _patchify_transpose_kernel(x_ref, o_ref, *, start, width):
    """Contiguous windows (patch_stride == patch_length).
    x_ref: (TB, S, C)   o_ref: (TB, C, P*L)."""
    def body(b, carry):
        xb = x_ref[b]                                   # (S, C)
        o_ref[b] = xb[start:start + width, :].T         # (C, P*L): one wide store
        return carry
    jax.lax.fori_loop(0, o_ref.shape[0], body, 0)


def _patchify_gather_kernel(x_ref, g_ref, o_ref):
    """General (overlapping / strided) windows via a one-hot MXU gather.
    x_ref: (TB, S, C)   g_ref: (S, P*L) one-hot selection matrix   o_ref: (TB, C, P*L)."""
    def body(b, carry):
        xt = x_ref[b].T                                 # (C, S): single in-VMEM transpose
        o_ref[b] = jnp.dot(                             # (C, P*L): gather on the idle MXU
            xt, g_ref[...],
            preferred_element_type=jnp.float32,
            precision=jax.lax.Precision.HIGHEST,
        ).astype(o_ref.dtype)                           # one wide lane-dense store
        return carry
    jax.lax.fori_loop(0, o_ref.shape[0], body, 0)


# ----------------------------- wrapper ------------------------------------------------ #

def patchify(x, *, patch_length, patch_stride):
    """x: (batch, sequence_length, num_channels) float array.
       returns: (batch, num_channels, num_patches, patch_length)."""
    B, S, C = x.shape
    L, stride = patch_length, patch_stride
    if S <= L:
        raise ValueError(
            f"Sequence length ({S}) has to be greater than the patch length ({L})")
    P = (max(S, L) - L) // stride + 1
    start = S - (L + stride * (P - 1))
    K = P * L
    dtype = x.dtype
    itemsize = jnp.dtype(dtype).itemsize
    contiguous = (stride == L)

    # ---- batch-block (TB) sizing against the *padded* VMEM tile cost -----------------
    in_elem_vmem = _round_up(S, 8) * _round_up(C, 128) * itemsize     # (S, C) tile, lane-padded
    out_elem_vmem = _round_up(C, 8) * _round_up(K, 128) * itemsize    # (C, K) tile
    g_vmem = 0 if contiguous else _round_up(S, 8) * _round_up(K, 128) * itemsize
    useful_elem = (S * C + C * K) * itemsize                          # HBM bytes actually moved

    VMEM_CAP = 24 << 20          # per-step working-set cap (safe on v7x 64 MiB physical)
    TARGET = 1 << 20             # ~1 MiB of useful data per grid step
    tb = max(1, TARGET // max(useful_elem, 1))
    tb_cap = max(1, (VMEM_CAP - 2 * g_vmem) // max(2 * (in_elem_vmem + out_elem_vmem), 1))
    tb = int(max(1, min(B, tb, tb_cap)))

    vmem_needed = 2 * tb * (in_elem_vmem + out_elem_vmem) + 2 * g_vmem
    vmem_limit = int(min(32 << 20, max(16 << 20, vmem_needed + (2 << 20))))

    grid = (pl.cdiv(B, tb),)
    compiler_params = pltpu.CompilerParams(
        dimension_semantics=("parallel",),
        vmem_limit_bytes=vmem_limit,
    )

    x_spec = pl.BlockSpec((tb, S, C), lambda i: (i, 0, 0))
    o_spec = pl.BlockSpec((tb, C, K), lambda i: (i, 0, 0))
    out_shape = jax.ShapeDtypeStruct((B, C, K), dtype)

    if contiguous:
        kernel = functools.partial(_patchify_transpose_kernel, start=start, width=K)
        out = pl.pallas_call(
            kernel,
            out_shape=out_shape,
            grid=grid,
            in_specs=[x_spec],
            out_specs=o_spec,
            compiler_params=compiler_params,
        )(x)
    else:
        # One-hot selection matrix G[s, p*L + l] = 1  iff  s == start + p*stride + l.
        # Built once at trace time (constant), shared (same block) by every grid step.
        k_idx = np.arange(K)
        seq_idx = start + (k_idx // L) * stride + (k_idx % L)
        g_np = np.zeros((S, K), dtype=np.float32)
        g_np[seq_idx, k_idx] = 1.0
        g = jnp.asarray(g_np).astype(dtype)
        g_spec = pl.BlockSpec((S, K), lambda i: (0, 0))
        out = pl.pallas_call(
            _patchify_gather_kernel,
            out_shape=out_shape,
            grid=grid,
            in_specs=[x_spec, g_spec],
            out_specs=o_spec,
            compiler_params=compiler_params,
        )(x, g)

    # Splitting the lane-dense last dim (P*L) -> (P, L) is a free view.
    return out.reshape(B, C, P, L)


# ----------------------------- pure-JAX reference ------------------------------------- #

def _ref_patchify(x, *, patch_length, patch_stride):
    B, S, C = x.shape
    P = (max(S, patch_length) - patch_length) // patch_stride + 1
    start = S - (patch_length + patch_stride * (P - 1))
    windows = jnp.stack(
        [x[:, start + p * patch_stride:start + p * patch_stride + patch_length, :]
         for p in range(P)], axis=1)                  # (B, P, L, C)  == torch unfold order
    return jnp.transpose(windows, (0, 3, 1, 2))       # (B, C, P, L)  == transpose(-2,-3)


# ----------------------------- main ---------------------------------------------------- #

if __name__ == "__main__":
    # 1) overlapping patches with non-zero sequence_start (general MXU-gather path)
    #    context_length=103, patch_length=16, patch_stride=12 -> P=8, start=3
    x1 = jax.random.normal(jax.random.PRNGKey(0), (2, 103, 4), jnp.float32)
    out1 = jax.block_until_ready(patchify(x1, patch_length=16, patch_stride=12))
    assert out1.shape == (2, 4, 8, 16)
    ref1 = _ref_patchify(x1, patch_length=16, patch_stride=12)
    np.testing.assert_allclose(np.asarray(out1), np.asarray(ref1), rtol=1e-5, atol=1e-6)

    # 2) non-overlapping contiguous patches (transpose fast path, bit-exact)
    x2 = jax.random.normal(jax.random.PRNGKey(1), (2, 128, 4), jnp.float32)
    out2 = jax.block_until_ready(patchify(x2, patch_length=16, patch_stride=16))
    assert out2.shape == (2, 4, 8, 16)
    ref2 = _ref_patchify(x2, patch_length=16, patch_stride=16)
    np.testing.assert_allclose(np.asarray(out2), np.asarray(ref2), rtol=0, atol=0)

    # 3) strided patches with gaps (stride > patch_length), non-zero start
    #    context_length=128, patch_length=16, patch_stride=20 -> P=6, start=12
    x3 = jax.random.normal(jax.random.PRNGKey(2), (2, 128, 4), jnp.float32)
    out3 = jax.block_until_ready(patchify(x3, patch_length=16, patch_stride=20))
    assert out3.shape == (2, 4, 6, 16)
    ref3 = _ref_patchify(x3, patch_length=16, patch_stride=20)
    np.testing.assert_allclose(np.asarray(out3), np.asarray(ref3), rtol=1e-5, atol=1e-6)

    print("KERNEL_OK")
</pallas_src>

<mosaic_0001>
module attributes {stable_mosaic.version = 11 : i64} {
  func.func @_patchify_gather_kernel(%arg0: i32, %arg1: memref<2x103x4xf32, #tpu.memory_space<vmem>>, %arg2: memref<103x128xf32, #tpu.memory_space<vmem>>, %arg3: memref<2x4x128xf32, #tpu.memory_space<vmem>>) attributes {dimension_semantics = [#tpu.dimension_semantics<parallel>], iteration_bounds = array<i64: 1>, scalar_prefetch = 0 : i64, scratch_operands = 0 : i64, tpu.core_type = #tpu.core_type<tc>, window_params = [{transform_indices = @transform_0, window_bounds = array<i64: 2, 103, 4>}, {pipeline_mode = #tpu.pipeline_mode<synchronous>, transform_indices = @transform_1, window_bounds = array<i64: 103, 128>}, {transform_indices = @transform_2, window_bounds = array<i64: 2, 4, 128>}]} {
    %c0_i32 = arith.constant 0 : i32
    %c2_i32 = arith.constant 2 : i32
    %0 = arith.addi %c0_i32, %c2_i32 : i32
    %c1_i32 = arith.constant 1 : i32
    scf.for %arg4 = %c0_i32 to %0 step %c1_i32  : i32 {
      %1 = arith.index_cast %arg4 : i32 to index
      %c0 = arith.constant 0 : index
      %c0_1 = arith.constant 0 : index
      %2 = vector.load %arg1[%1, %c0, %c0_1] : memref<2x103x4xf32, #tpu.memory_space<vmem>>, vector<1x103x4xf32>
      %3 = vector.shape_cast %2 : vector<1x103x4xf32> to vector<103x4xf32>
      %4 = tpu.transpose %3, [1, 0] : vector<103x4xf32> -> vector<4x103xf32>
      %c0_2 = arith.constant 0 : index
      %c0_3 = arith.constant 0 : index
      %5 = vector.load %arg2[%c0_2, %c0_3] : memref<103x128xf32, #tpu.memory_space<vmem>>, vector<103x128xf32>
      %cst = arith.constant dense<0.000000e+00> : vector<4x128xf32>
      %6 = tpu.matmul %4, %5, %cst {dimension_numbers = #tpu.dot_dimension_numbers<[1], [0], [0], [1], [0, 0, 1, 1], [], []>, precision = #tpu.contract_precision<fp32>} : vector<4x103xf32>, vector<103x128xf32>, vector<4x128xf32> -> vector<4x128xf32>
      %7 = arith.index_cast %arg4 : i32 to index
      %c0_4 = arith.constant 0 : index
      %c0_5 = arith.constant 0 : index
      %8 = vector.load %arg3[%7, %c0_4, %c0_5] : memref<2x4x128xf32, #tpu.memory_space<vmem>>, vector<1x4x128xf32>
      %9 = vector.shape_cast %8 : vector<1x4x128xf32> to vector<4x128xf32>
      %10 = vector.shape_cast %6 : vector<4x128xf32> to vector<1x4x128xf32>
      tpu.vector_store %arg3[%7, %c0_4, %c0_5], %10 {strides = array<i32>} : memref<2x4x128xf32, #tpu.memory_space<vmem>>, vector<1x4x128xf32>,
    }
    %c2_i32_0 = arith.constant 2 : i32
    return
  }
  func.func @transform_0(%arg0: i32) -> (i32, i32, i32) {
    %c0_i32 = arith.constant 0 : i32
    %c0_i32_0 = arith.constant 0 : i32
    %c0_i32_1 = arith.constant 0 : i32
    return %arg0, %c0_i32, %c0_i32_0 : i32, i32, i32
  }
  func.func @transform_1(%arg0: i32) -> (i32, i32) {
    %c0_i32 = arith.constant 0 : i32
    %c0_i32_0 = arith.constant 0 : i32
    %c0_i32_1 = arith.constant 0 : i32
    return %c0_i32, %c0_i32_0 : i32, i32
  }
  func.func @transform_2(%arg0: i32) -> (i32, i32, i32) {
    %c0_i32 = arith.constant 0 : i32
    %c0_i32_0 = arith.constant 0 : i32
    %c0_i32_1 = arith.constant 0 : i32
    return %arg0, %c0_i32, %c0_i32_0 : i32, i32, i32
  }
}

</mosaic_0001>

<llo_original>
// kernel: tpu_custom_call.1
$region0: #{tpu_custom_call.1}
  #allocation0 [shape = 'u32[]', space=smem, size = 0x4, offset = 0x4, fixed_abs, tag = 'smem constant byte address 0x4 - core index']
  #allocation1 [shape = 'u32[144,128]{1,0:T(1,128)}', space=vmem, size = 0x12000, scoped, tag = 'internal scratch']
  %s0 = inlined_call_operand.vmem [shape: f32[2,103,4], index: 0, kind: input, shape index: {}]
  %s1 = inlined_call_operand.vmem [shape: f32[103,128], index: 1, kind: input, shape index: {}]
  %s2 = inlined_call_operand.hbm [shape: f32[2,4,128], index: 2, kind: output, shape index: {}]
  %s3 = sld [smem:[#allocation0]]
  $region25: #{tpu_custom_call.1} parent=0
    _
  %s5 = ssub.s32 1, %s3
  %s6 = scalar_select 0, %s5, %s3
  $region1: #{tpu_custom_call.1} parent=0
    #allocation2 [shape = 'u8[4096]{0}', space=vmem, size = 0x1000, scoped, tag = 'output window, operand 0, single buffered']
    #allocation3 [shape = 's32[1]{0}', space=sflag, size = 0x4, scoped, tag = 'scoped memory for tpu_custom_call.1']
    %7 = vsyncpa [#allocation3], 0
    // Predicated region
    $region2: #{tpu_custom_call.1} parent=1 // pred_check
      _
    $region3: #{tpu_custom_call.1} parent=1 // pred_check_branch
      %9 = sbr.rel (0) target = $region5
    $region4: #{tpu_custom_call.1} parent=1 // pred_region
      _
    $region5: #{tpu_custom_call.1} parent=1 // pred_fallthru
      _
    // Predicated region
    $region6: #{tpu_custom_call.1} parent=1 // pred_check
      _
    $region7: #{tpu_custom_call.1} parent=1 // pred_check_branch
      %11 = sbr.rel (0) target = $region9
    $region8: #{tpu_custom_call.1} parent=1 // pred_region
      _
    $region9: #{tpu_custom_call.1} parent=1 // pred_fallthru
      _
    loop: start=0, step=1, limit=2
    $region10: #{tpu_custom_call.1} parent=1 // loop_pre_header
      _
    $region11: #{tpu_custom_call.1} parent=1 // loop_header
      %s13 = sphi 0, %s17
      %p14 = scmp.ge.s32.totalorder %s13, 2
    $region12: #{tpu_custom_call.1} parent=1 // loop_header_branch
      %16 = sbr.rel (%p14) target = $region16
    $region13: #{tpu_custom_call.1} parent=1 // loop_body
      %s18 = smul.u32 %s13, 104
      %s19 = scalar_lea.vmem %s0, %s18
      %v20 = vld [vmem:[%s19] sm:$0xff]
      %v21 = vld [vmem:[%s19 + $0x8] sm:$0xff]
      %v22 = vld [vmem:[%s19 + $0x10] sm:$0xff]
      %v23 = vld [vmem:[%s19 + $0x18] sm:$0xff]
      %v24 = vld [vmem:[%s19 + $0x20] sm:$0xff]
      %v25 = vld [vmem:[%s19 + $0x28] sm:$0xff]
      %v26 = vld [vmem:[%s19 + $0x30] sm:$0xff]
      %v27 = vld [vmem:[%s19 + $0x38] sm:$0xff]
      %v28 = vld [vmem:[%s19 + $0x40] sm:$0xff]
      %v29 = vld [vmem:[%s19 + $0x48] sm:$0xff]
      %v30 = vld [vmem:[%s19 + $0x50] sm:$0xff]
      %v31 = vld [vmem:[%s19 + $0x58] sm:$0xff]
      %v32 = vld [vmem:[%s19 + $0x60] sm:$0x7f]
      %33 = vxpose.xlu0.b32.start [1/16] %v20, 128
      %34 = vxpose.xlu0.b32.cont [2/16] %v21, 128
      %35 = vxpose.xlu0.b32.cont [3/16] %v22, 128
      %36 = vxpose.xlu0.b32.cont [4/16] %v23, 128
      %37 = vxpose.xlu0.b32.cont [5/16] %v24, 128
      %38 = vxpose.xlu0.b32.cont [6/16] %v25, 128
      %39 = vxpose.xlu0.b32.cont [7/16] %v26, 128
      %40 = vxpose.xlu0.b32.cont [8/16] %v27, 128
      %41 = vxpose.xlu0.b32.cont [9/16] %v28, 128
      %42 = vxpose.xlu0.b32.cont [10/16] %v29, 128
      %43 = vxpose.xlu0.b32.cont [11/16] %v30, 128
      %44 = vxpose.xlu0.b32.cont [12/16] %v31, 128
      %45 = vxpose.xlu0.b32.cont [13/16] %v32, 128
      %46 = vxpose.xlu0.b32.cont [14/16] 0.0, 128
      %47 = vxpose.xlu0.b32.cont [15/16] 0.0, 128
      %48 = vxpose.xlu0.b32.end [16/16] 0.0, 128
      %v49 = vpop.trf.xlu0
      %v50 = vpop.trf.xlu0
      %v51 = vpop.trf.xlu0
      %v52 = vpop.trf.xlu0
      %v53 = vpop.trf.xlu0
      %v54 = vpop.trf.xlu0
      %v55 = vpop.trf.xlu0
      %v56 = vpop.trf.xlu0
      %v57 = vpop.trf.xlu0
      %v58 = vpop.trf.xlu0
      %v59 = vpop.trf.xlu0
      %v60 = vpop.trf.xlu0
      %v61 = vpop.trf.xlu0
      %v62 = vpop.trf.xlu0
      %v63 = vpop.trf.xlu0
      %v64 = vpop.trf.xlu0
      %v65 = vld [vmem:[%s1] sm:$0xff]
      %v66 = vld [vmem:[%s1 + $0x8] sm:$0xff]
      %v67 = vld [vmem:[%s1 + $0x10] sm:$0xff]
      %v68 = vld [vmem:[%s1 + $0x18] sm:$0xff]
      %v69 = vld [vmem:[%s1 + $0x20] sm:$0xff]
      %v70 = vld [vmem:[%s1 + $0x28] sm:$0xff]
      %v71 = vld [vmem:[%s1 + $0x30] sm:$0xff]
      %v72 = vld [vmem:[%s1 + $0x38] sm:$0xff]
      %v73 = vld [vmem:[%s1 + $0x40] sm:$0xff]
      %v74 = vld [vmem:[%s1 + $0x48] sm:$0xff]
      %v75 = vld [vmem:[%s1 + $0x50] sm:$0xff]
      %v76 = vld [vmem:[%s1 + $0x58] sm:$0xff]
      %v77 = vld [vmem:[%s1 + $0x60] sm:$0x7f]
      %vm78 = vcmask 842752
      %v80 = vsel %vm78, %v49, 0
      %vm82 = vcmask 1046528
      %v84 = vsel %vm82, %v77, 0
      %86 = vmatprep.subr.mxu0 0.0
      %v87 = vand.u32 %v65, 4294901760
      %88 = vmatpush1.msra.mxu0 %v87
      %89 = vmatprep.subr.mxu0 0.0
      %v90 = vand.u32 %v66, 4294901760
      %91 = vmatpush1.msra.mxu0 %v90
      %92 = vmatprep.subr.mxu0 0.0
      %v93 = vand.u32 %v67, 4294901760
      %94 = vmatpush1.msra.mxu0 %v93
      %95 = vmatprep.subr.mxu0 0.0
      %v96 = vand.u32 %v68, 4294901760
      %97 = vmatpush1.msra.mxu0 %v96
      %98 = vmatprep.subr.mxu0 0.0
      %v99 = vand.u32 %v69, 4294901760
      %100 = vmatpush1.msra.mxu0 %v99
      %101 = vmatprep.subr.mxu0 0.0
      %v102 = vand.u32 %v70, 4294901760
      %103 = vmatpush1.msra.mxu0 %v102
      %104 = vmatprep.subr.mxu0 0.0
      %v105 = vand.u32 %v71, 4294901760
      %106 = vmatpush1.msra.mxu0 %v105
      %107 = vmatprep.subr.mxu0 0.0
      %v108 = vand.u32 %v72, 4294901760
      %109 = vmatpush1.msra.mxu0 %v108
      %110 = vmatprep.subr.mxu0 0.0
      %v111 = vand.u32 %v73, 4294901760
      %112 = vmatpush1.msra.mxu0 %v111
      %113 = vmatprep.subr.mxu0 0.0
      %v114 = vand.u32 %v74, 4294901760
      %115 = vmatpush1.msra.mxu0 %v114
      %116 = vmatprep.subr.mxu0 0.0
      %v117 = vand.u32 %v75, 4294901760
      %118 = vmatpush1.msra.mxu0 %v117
      %119 = vmatprep.subr.mxu0 0.0
      %v120 = vand.u32 %v76, 4294901760
      %121 = vmatpush1.msra.mxu0 %v120
      %122 = vmatprep.subr.mxu0 0.0
      %v123 = vand.u32 %v84, 4294901760
      %124 = vmatpush1.msra.mxu0 %v123
      %125 = vmatprep.subr.mxu0 0.0
      %126 = vmatpush1.msra.mxu0 0.0
      %127 = vmatprep.subr.mxu0 0.0
      %128 = vmatpush1.msra.mxu0 0.0
      %129 = vmatprep.subr.mxu0 0.0
      %130 = vmatpush1.msra.mxu0 0.0
      %131 = vmatprep.subr.mxu0 0.0
      %132 = vmatpush1.msra.mxu0 0.0
      %133 = vmatprep.subr.mxu0 0.0
      %134 = vmatpush1.msra.mxu0 0.0
      %135 = vmatprep.subr.mxu0 0.0
      %136 = vmatpush1.msra.mxu0 0.0
      %137 = vmatprep.subr.mxu0 0.0
      %138 = vmatpush1.msra.mxu0 0.0
      %139 = vmatprep.subr.mxu0 0.0
      %140 = vmatpush1.msra.mxu0 0.0
      %141 = vmatprep.subr.mxu0 0.0
      %142 = vmatpush1.msra.mxu0 0.0
      %143 = vmatprep.subr.mxu0 0.0
      %144 = vmatpush1.msra.mxu0 0.0
      %145 = vmatprep.subr.mxu0 0.0
      %146 = vmatpush1.msra.mxu0 0.0
      %147 = vmatprep.subr.mxu0 0.0
      %148 = vmatpush1.msra.mxu0 0.0
      %149 = vmatprep.subr.mxu0 0.0
      %150 = vmatpush1.msra.mxu0 0.0
      %151 = vmatprep.subr.mxu0 0.0
      %152 = vmatpush1.msra.mxu0 0.0
      %153 = vmatprep.subr.mxu0 0.0
      %154 = vmatpush1.msra.mxu0 0.0
      %155 = vmatprep.subr.mxu0 0.0
      %156 = vmatpush1.msra.mxu0 0.0
      %157 = vmatprep.subr.mxu0 0.0
      %158 = vmatpush1.msra.mxu0 0.0
      %159 = vmatprep.subr.mxu0 0.0
      %160 = vmatpush1.msra.mxu0 0.0
      %161 = vmatprep.subr.mxu0 0.0
      %162 = vmatpush1.msra.mxu0 0.0
      %163 = vmatprep.mubr.f32.mxu0 0.0
      %v164 = vand.u32 %v80, 4294901760
      %v165 = vsub.f32 %v80, %v164
      %v166 = vand.u32 %v165, 4294901760
      %v167 = vsub.f32 %v165, %v166
      %v168 = vand.u32 %v167, 4294901760
      %169 = vmatmul.mubr.f32.gmra.mrb[0].mxu0 %v168
      %v170 = vpop.f32.mrb[0].mxu0
      %v171 = vadd.f32 0.0, %v170
      %v172 = vpop.f32.mrb[0].mxu0
      %173 = vdwg.mxu0
      %174 = vmatprep.subr.mxu0 0.0
      %v175 = vand.u32 %v65, 4294901760
      %v176 = vsub.f32 %v65, %v175
      %v177 = vand.u32 %v176, 4294901760
      %v178 = vsub.f32 %v176, %v177
      %v179 = vand.u32 %v178, 4294901760
      %180 = vmatpush1.msra.mxu0 %v179
      %181 = vmatprep.subr.mxu0 0.0
      %v182 = vand.u32 %v66, 4294901760
      %v183 = vsub.f32 %v66, %v182
      %v184 = vand.u32 %v183, 4294901760
      %v185 = vsub.f32 %v183, %v184
      %v186 = vand.u32 %v185, 4294901760
      %187 = vmatpush1.msra.mxu0 %v186
      %188 = vmatprep.subr.mxu0 0.0
      %v189 = vand.u32 %v67, 4294901760
      %v190 = vsub.f32 %v67, %v189
      %v191 = vand.u32 %v190, 4294901760
      %v192 = vsub.f32 %v190, %v191
      %v193 = vand.u32 %v192, 4294901760
      %194 = vmatpush1.msra.mxu0 %v193
      %195 = vmatprep.subr.mxu0 0.0
      %v196 = vand.u32 %v68, 4294901760
      %v197 = vsub.f32 %v68, %v196
      %v198 = vand.u32 %v197, 4294901760
      %v199 = vsub.f32 %v197, %v198
      %v200 = vand.u32 %v199, 4294901760
      %201 = vmatpush1.msra.mxu0 %v200
      %202 = vmatprep.subr.mxu0 0.0
      %v203 = vand.u32 %v69, 4294901760
      %v204 = vsub.f32 %v69, %v203
      %v205 = vand.u32 %v204, 4294901760
      %v206 = vsub.f32 %v204, %v205
      %v207 = vand.u32 %v206, 4294901760
      %208 = vmatpush1.msra.mxu0 %v207
      %209 = vmatprep.subr.mxu0 0.0
      %v210 = vand.u32 %v70, 4294901760
      %v211 = vsub.f32 %v70, %v210
      %v212 = vand.u32 %v211, 4294901760
      %v213 = vsub.f32 %v211, %v212
      %v214 = vand.u32 %v213, 4294901760
      %215 = vmatpush1.msra.mxu0 %v214
      %216 = vmatprep.subr.mxu0 0.0
      %v217 = vand.u32 %v71, 4294901760
      %v218 = vsub.f32 %v71, %v217
      %v219 = vand.u32 %v218, 4294901760
      %v220 = vsub.f32 %v218, %v219
      %v221 = vand.u32 %v220, 4294901760
      %222 = vmatpush1.msra.mxu0 %v221
      %223 = vmatprep.subr.mxu0 0.0
      %v224 = vand.u32 %v72, 4294901760
      %v225 = vsub.f32 %v72, %v224
      %v226 = vand.u32 %v225, 4294901760
      %v227 = vsub.f32 %v225, %v226
      %v228 = vand.u32 %v227, 4294901760
      %229 = vmatpush1.msra.mxu0 %v228
      %230 = vmatprep.subr.mxu0 0.0
      %v231 = vand.u32 %v73, 4294901760
      %v232 = vsub.f32 %v73, %v231
      %v233 = vand.u32 %v232, 4294901760
      %v234 = vsub.f32 %v232, %v233
      %v235 = vand.u32 %v234, 4294901760
      %236 = vmatpush1.msra.mxu0 %v235
      %237 = vmatprep.subr.mxu0 0.0
      %v238 = vand.u32 %v74, 4294901760
      %v239 = vsub.f32 %v74, %v238
      %v240 = vand.u32 %v239, 4294901760
      %v241 = vsub.f32 %v239, %v240
      %v242 = vand.u32 %v241, 4294901760
      %243 = vmatpush1.msra.mxu0 %v242
      %244 = vmatprep.subr.mxu0 0.0
      %v245 = vand.u32 %v75, 4294901760
      %v246 = vsub.f32 %v75, %v245
      %v247 = vand.u32 %v246, 4294901760
      %v248 = vsub.f32 %v246, %v247
      %v249 = vand.u32 %v248, 4294901760
      %250 = vmatpush1.msra.mxu0 %v249
      %251 = vmatprep.subr.mxu0 0.0
      %v252 = vand.u32 %v76, 4294901760
      %v253 = vsub.f32 %v76, %v252
      %v254 = vand.u32 %v253, 4294901760
      %v255 = vsub.f32 %v253, %v254
      %v256 = vand.u32 %v255, 4294901760
      %257 = vmatpush1.msra.mxu0 %v256
      %258 = vmatprep.subr.mxu0 0.0
      %v259 = vand.u32 %v84, 4294901760
      %v260 = vsub.f32 %v84, %v259
      %v261 = vand.u32 %v260, 4294901760
      %v262 = vsub.f32 %v260, %v261
      %v263 = vand.u32 %v262, 4294901760
      %264 = vmatpush1.msra.mxu0 %v263
      %265 = vmatprep.subr.mxu0 0.0
      %266 = vmatpush1.msra.mxu0 0.0
      %267 = vmatprep.subr.mxu0 0.0
      %268 = vmatpush1.msra.mxu0 0.0
      %269 = vmatprep.subr.mxu0 0.0
      %270 = vmatpush1.msra.mxu0 0.0
      %271 = vmatprep.subr.mxu0 0.0
      %272 = vmatpush1.msra.mxu0 0.0
      %273 = vmatprep.subr.mxu0 0.0
      %274 = vmatpush1.msra.mxu0 0.0
      %275 = vmatprep.subr.mxu0 0.0
      %276 = vmatpush1.msra.mxu0 0.0
      %277 = vmatprep.subr.mxu0 0.0
      %278 = vmatpush1.msra.mxu0 0.0
      %279 = vmatprep.subr.mxu0 0.0
      %280 = vmatpush1.msra.mxu0 0.0
      %281 = vmatprep.subr.mxu0 0.0
      %282 = vmatpush1.msra.mxu0 0.0
      %283 = vmatprep.subr.mxu0 0.0
      %284 = vmatpush1.msra.mxu0 0.0
      %285 = vmatprep.subr.mxu0 0.0
      %286 = vmatpush1.msra.mxu0 0.0
      %287 = vmatprep.subr.mxu0 0.0
      %288 = vmatpush1.msra.mxu0 0.0
      %289 = vmatprep.subr.mxu0 0.0
      %290 = vmatpush1.msra.mxu0 0.0
      %291 = vmatprep.subr.mxu0 0.0
      %292 = vmatpush1.msra.mxu0 0.0
      %293 = vmatprep.subr.mxu0 0.0
      %294 = vmatpush1.msra.mxu0 0.0
      %295 = vmatprep.subr.mxu0 0.0
      %296 = vmatpush1.msra.mxu0 0.0
      %297 = vmatprep.subr.mxu0 0.0
      %298 = vmatpush1.msra.mxu0 0.0
      %299 = vmatprep.subr.mxu0 0.0
      %300 = vmatpush1.msra.mxu0 0.0
      %301 = vmatprep.subr.mxu0 0.0
      %302 = vmatpush1.msra.mxu0 0.0
      %303 = vmatprep.mubr.f32.mxu0 0.0
      %v304 = vand.u32 %v80, 4294901760
      %305 = vmatmul.mubr.f32.gmra.mrb[0].mxu0 %v304
      %v306 = vpop.f32.mrb[0].mxu0
      %v307 = vadd.f32 %v171, %v306
      %v308 = vpop.f32.mrb[0].mxu0
      %309 = vdwg.mxu0
      %310 = vmatprep.subr.mxu0 0.0
      %v311 = vand.u32 %v65, 4294901760
      %v312 = vsub.f32 %v65, %v311
      %313 = vmatpush1.msra.mxu0 %v312
      %314 = vmatprep.subr.mxu0 0.0
      %v315 = vand.u32 %v66, 4294901760
      %v316 = vsub.f32 %v66, %v315
      %317 = vmatpush1.msra.mxu0 %v316
      %318 = vmatprep.subr.mxu0 0.0
      %v319 = vand.u32 %v67, 4294901760
      %v320 = vsub.f32 %v67, %v319
      %321 = vmatpush1.msra.mxu0 %v320
      %322 = vmatprep.subr.mxu0 0.0
      %v323 = vand.u32 %v68, 4294901760
      %v324 = vsub.f32 %v68, %v323
      %325 = vmatpush1.msra.mxu0 %v324
      %326 = vmatprep.subr.mxu0 0.0
      %v327 = vand.u32 %v69, 4294901760
      %v328 = vsub.f32 %v69, %v327
      %329 = vmatpush1.msra.mxu0 %v328
      %330 = vmatprep.subr.mxu0 0.0
      %v331 = vand.u32 %v70, 4294901760
      %v332 = vsub.f32 %v70, %v331
      %333 = vmatpush1.msra.mxu0 %v332
      %334 = vmatprep.subr.mxu0 0.0
      %v335 = vand.u32 %v71, 4294901760
      %v336 = vsub.f32 %v71, %v335
      %337 = vmatpush1.msra.mxu0 %v336
      %338 = vmatprep.subr.mxu0 0.0
      %v339 = vand.u32 %v72, 4294901760
      %v340 = vsub.f32 %v72, %v339
      %341 = vmatpush1.msra.mxu0 %v340
      %342 = vmatprep.subr.mxu0 0.0
      %v343 = vand.u32 %v73, 4294901760
      %v344 = vsub.f32 %v73, %v343
      %345 = vmatpush1.msra.mxu0 %v344
      %346 = vmatprep.subr.mxu0 0.0
      %v347 = vand.u32 %v74, 4294901760
      %v348 = vsub.f32 %v74, %v347
      %349 = vmatpush1.msra.mxu0 %v348
      %350 = vmatprep.subr.mxu0 0.0
      %v351 = vand.u32 %v75, 4294901760
      %v352 = vsub.f32 %v75, %v351
      %353 = vmatpush1.msra.mxu0 %v352
      %354 = vmatprep.subr.mxu0 0.0
      %v355 = vand.u32 %v76, 4294901760
      %v356 = vsub.f32 %v76, %v355
      %357 = vmatpush1.msra.mxu0 %v356
      %358 = vmatprep.subr.mxu0 0.0
      %v359 = vand.u32 %v84, 4294901760
      %v360 = vsub.f32 %v84, %v359
      %361 = vmatpush1.msra.mxu0 %v360
      %362 = vmatprep.subr.mxu0 0.0
      %363 = vmatpush1.msra.mxu0 0.0
      %364 = vmatprep.subr.mxu0 0.0
      %365 = vmatpush1.msra.mxu0 0.0
      %366 = vmatprep.subr.mxu0 0.0
      %367 = vmatpush1.msra.mxu0 0.0
      %368 = vmatprep.subr.mxu0 0.0
      %369 = vmatpush1.msra.mxu0 0.0
      %370 = vmatprep.subr.mxu0 0.0
      %371 = vmatpush1.msra.mxu0 0.0
      %372 = vmatprep.subr.mxu0 0.0
      %373 = vmatpush1.msra.mxu0 0.0
      %374 = vmatprep.subr.mxu0 0.0
      %375 = vmatpush1.msra.mxu0 0.0
      %376 = vmatprep.subr.mxu0 0.0
      %377 = vmatpush1.msra.mxu0 0.0
      %378 = vmatprep.subr.mxu0 0.0
      %379 = vmatpush1.msra.mxu0 0.0
      %380 = vmatprep.subr.mxu0 0.0
      %381 = vmatpush1.msra.mxu0 0.0
      %382 = vmatprep.subr.mxu0 0.0
      %383 = vmatpush1.msra.mxu0 0.0
      %384 = vmatprep.subr.mxu0 0.0
      %385 = vmatpush1.msra.mxu0 0.0
      %386 = vmatprep.subr.mxu0 0.0
      %387 = vmatpush1.msra.mxu0 0.0
      %388 = vmatprep.subr.mxu0 0.0
      %389 = vmatpush1.msra.mxu0 0.0
      %390 = vmatprep.subr.mxu0 0.0
      %391 = vmatpush1.msra.mxu0 0.0
      %392 = vmatprep.subr.mxu0 0.0
      %393 = vmatpush1.msra.mxu0 0.0
      %394 = vmatprep.subr.mxu0 0.0
      %395 = vmatpush1.msra.mxu0 0.0
      %396 = vmatprep.subr.mxu0 0.0
      %397 = vmatpush1.msra.mxu0 0.0
      %398 = vmatprep.subr.mxu0 0.0
      %399 = vmatpush1.msra.mxu0 0.0
      %400 = vmatprep.mubr.f32.mxu0 0.0
      %v401 = vand.u32 %v80, 4294901760
      %v402 = vsub.f32 %v80, %v401
      %403 = vmatmul.mubr.f32.gmra.mrb[0].mxu0 %v402
      %v404 = vpop.f32.mrb[0].mxu0
      %v405 = vadd.f32 %v307, %v404
      %v406 = vpop.f32.mrb[0].mxu0
      %407 = vdwg.mxu0
      %408 = vmatprep.subr.mxu0 0.0
      %v409 = vand.u32 %v65, 4294901760
      %410 = vmatpush1.msra.mxu0 %v409
      %411 = vmatprep.subr.mxu0 0.0
      %v412 = vand.u32 %v66, 4294901760
      %413 = vmatpush1.msra.mxu0 %v412
      %414 = vmatprep.subr.mxu0 0.0
      %v415 = vand.u32 %v67, 4294901760
      %416 = vmatpush1.msra.mxu0 %v415
      %417 = vmatprep.subr.mxu0 0.0
      %v418 = vand.u32 %v68, 4294901760
      %419 = vmatpush1.msra.mxu0 %v418
      %420 = vmatprep.subr.mxu0 0.0
      %v421 = vand.u32 %v69, 4294901760
      %422 = vmatpush1.msra.mxu0 %v421
      %423 = vmatprep.subr.mxu0 0.0
      %v424 = vand.u32 %v70, 4294901760
      %425 = vmatpush1.msra.mxu0 %v424
      %426 = vmatprep.subr.mxu0 0.0
      %v427 = vand.u32 %v71, 4294901760
      %428 = vmatpush1.msra.mxu0 %v427
      %429 = vmatprep.subr.mxu0 0.0
      %v430 = vand.u32 %v72, 4294901760
      %431 = vmatpush1.msra.mxu0 %v430
      %432 = vmatprep.subr.mxu0 0.0
      %v433 = vand.u32 %v73, 4294901760
      %434 = vmatpush1.msra.mxu0 %v433
      %435 = vmatprep.subr.mxu0 0.0
      %v436 = vand.u32 %v74, 4294901760
      %437 = vmatpush1.msra.mxu0 %v436
      %438 = vmatprep.subr.mxu0 0.0
      %v439 = vand.u32 %v75, 4294901760
      %440 = vmatpush1.msra.mxu0 %v439
      %441 = vmatprep.subr.mxu0 0.0
      %v442 = vand.u32 %v76, 4294901760
      %443 = vmatpush1.msra.mxu0 %v442
      %444 = vmatprep.subr.mxu0 0.0
      %v445 = vand.u32 %v84, 4294901760
      %446 = vmatpush1.msra.mxu0 %v445
      %447 = vmatprep.subr.mxu0 0.0
      %448 = vmatpush1.msra.mxu0 0.0
      %449 = vmatprep.subr.mxu0 0.0
      %450 = vmatpush1.msra.mxu0 0.0
      %451 = vmatprep.subr.mxu0 0.0
      %452 = vmatpush1.msra.mxu0 0.0
      %453 = vmatprep.subr.mxu0 0.0
      %454 = vmatpush1.msra.mxu0 0.0
      %455 = vmatprep.subr.mxu0 0.0
      %456 = vmatpush1.msra.mxu0 0.0
      %457 = vmatprep.subr.mxu0 0.0
      %458 = vmatpush1.msra.mxu0 0.0
      %459 = vmatprep.subr.mxu0 0.0
      %460 = vmatpush1.msra.mxu0 0.0
      %461 = vmatprep.subr.mxu0 0.0
      %462 = vmatpush1.msra.mxu0 0.0
      %463 = vmatprep.subr.mxu0 0.0
      %464 = vmatpush1.msra.mxu0 0.0
      %465 = vmatprep.subr.mxu0 0.0
      %466 = vmatpush1.msra.mxu0 0.0
      %467 = vmatprep.subr.mxu0 0.0
      %468 = vmatpush1.msra.mxu0 0.0
      %469 = vmatprep.subr.mxu0 0.0
      %470 = vmatpush1.msra.mxu0 0.0
      %471 = vmatprep.subr.mxu0 0.0
      %472 = vmatpush1.msra.mxu0 0.0
      %473 = vmatprep.subr.mxu0 0.0
      %474 = vmatpush1.msra.mxu0 0.0
      %475 = vmatprep.subr.mxu0 0.0
      %476 = vmatpush1.msra.mxu0 0.0
      %477 = vmatprep.subr.mxu0 0.0
      %478 = vmatpush1.msra.mxu0 0.0
      %479 = vmatprep.subr.mxu0 0.0
      %480 = vmatpush1.msra.mxu0 0.0
      %481 = vmatprep.subr.mxu0 0.0
      %482 = vmatpush1.msra.mxu0 0.0
      %483 = vmatprep.subr.mxu0 0.0
      %484 = vmatpush1.msra.mxu0 0.0
      %485 = vmatprep.mubr.f32.mxu0 0.0
      %v486 = vand.u32 %v80, 4294901760
      %v487 = vsub.f32 %v80, %v486
      %v488 = vand.u32 %v487, 4294901760
      %489 = vmatmul.mubr.f32.gmra.mrb[0].mxu0 %v488
      %v490 = vpop.f32.mrb[0].mxu0
      %v491 = vadd.f32 %v405, %v490
      %v492 = vpop.f32.mrb[0].mxu0
      %493 = vdwg.mxu0
      %494 = vmatprep.subr.mxu0 0.0
      %v495 = vand.u32 %v65, 4294901760
      %v496 = vsub.f32 %v65, %v495
      %v497 = vand.u32 %v496, 4294901760
      %498 = vmatpush1.msra.mxu0 %v497
      %499 = vmatprep.subr.mxu0 0.0
      %v500 = vand.u32 %v66, 4294901760
      %v501 = vsub.f32 %v66, %v500
      %v502 = vand.u32 %v501, 4294901760
      %503 = vmatpush1.msra.mxu0 %v502
      %504 = vmatprep.subr.mxu0 0.0
      %v505 = vand.u32 %v67, 4294901760
      %v506 = vsub.f32 %v67, %v505
      %v507 = vand.u32 %v506, 4294901760
      %508 = vmatpush1.msra.mxu0 %v507
      %509 = vmatprep.subr.mxu0 0.0
      %v510 = vand.u32 %v68, 4294901760
      %v511 = vsub.f32 %v68, %v510
      %v512 = vand.u32 %v511, 4294901760
      %513 = vmatpush1.msra.mxu0 %v512
      %514 = vmatprep.subr.mxu0 0.0
      %v515 = vand.u32 %v69, 4294901760
      %v516 = vsub.f32 %v69, %v515
      %v517 = vand.u32 %v516, 4294901760
      %518 = vmatpush1.msra.mxu0 %v517
      %519 = vmatprep.subr.mxu0 0.0
      %v520 = vand.u32 %v70, 4294901760
      %v521 = vsub.f32 %v70, %v520
      %v522 = vand.u32 %v521, 4294901760
      %523 = vmatpush1.msra.mxu0 %v522
      %524 = vmatprep.subr.mxu0 0.0
      %v525 = vand.u32 %v71, 4294901760
      %v526 = vsub.f32 %v71, %v525
      %v527 = vand.u32 %v526, 4294901760
      %528 = vmatpush1.msra.mxu0 %v527
      %529 = vmatprep.subr.mxu0 0.0
      %v530 = vand.u32 %v72, 4294901760
      %v531 = vsub.f32 %v72, %v530
      %v532 = vand.u32 %v531, 4294901760
      %533 = vmatpush1.msra.mxu0 %v532
      %534 = vmatprep.subr.mxu0 0.0
      %v535 = vand.u32 %v73, 4294901760
      %v536 = vsub.f32 %v73, %v535
      %v537 = vand.u32 %v536, 4294901760
      %538 = vmatpush1.msra.mxu0 %v537
      %539 = vmatprep.subr.mxu0 0.0
      %v540 = vand.u32 %v74, 4294901760
      %v541 = vsub.f32 %v74, %v540
      %v542 = vand.u32 %v541, 4294901760
      %543 = vmatpush1.msra.mxu0 %v542
      %544 = vmatprep.subr.mxu0 0.0
      %v545 = vand.u32 %v75, 4294901760
      %v546 = vsub.f32 %v75, %v545
      %v547 = vand.u32 %v546, 4294901760
      %548 = vmatpush1.msra.mxu0 %v547
      %549 = vmatprep.subr.mxu0 0.0
      %v550 = vand.u32 %v76, 4294901760
      %v551 = vsub.f32 %v76, %v550
      %v552 = vand.u32 %v551, 4294901760
      %553 = vmatpush1.msra.mxu0 %v552
      %554 = vmatprep.subr.mxu0 0.0
      %v555 = vand.u32 %v84, 4294901760
      %v556 = vsub.f32 %v84, %v555
      %v557 = vand.u32 %v556, 4294901760
      %558 = vmatpush1.msra.mxu0 %v557
      %559 = vmatprep.subr.mxu0 0.0
      %560 = vmatpush1.msra.mxu0 0.0
      %561 = vmatprep.subr.mxu0 0.0
      %562 = vmatpush1.msra.mxu0 0.0
      %563 = vmatprep.subr.mxu0 0.0
      %564 = vmatpush1.msra.mxu0 0.0
      %565 = vmatprep.subr.mxu0 0.0
      %566 = vmatpush1.msra.mxu0 0.0
      %567 = vmatprep.subr.mxu0 0.0
      %568 = vmatpush1.msra.mxu0 0.0
      %569 = vmatprep.subr.mxu0 0.0
      %570 = vmatpush1.msra.mxu0 0.0
      %571 = vmatprep.subr.mxu0 0.0
      %572 = vmatpush1.msra.mxu0 0.0
      %573 = vmatprep.subr.mxu0 0.0
      %574 = vmatpush1.msra.mxu0 0.0
      %575 = vmatprep.subr.mxu0 0.0
      %576 = vmatpush1.msra.mxu0 0.0
      %577 = vmatprep.subr.mxu0 0.0
      %578 = vmatpush1.msra.mxu0 0.0
      %579 = vmatprep.subr.mxu0 0.0
      %580 = vmatpush1.msra.mxu0 0.0
      %581 = vmatprep.subr.mxu0 0.0
      %582 = vmatpush1.msra.mxu0 0.0
      %583 = vmatprep.subr.mxu0 0.0
      %584 = vmatpush1.msra.mxu0 0.0
      %585 = vmatprep.subr.mxu0 0.0
      %586 = vmatpush1.msra.mxu0 0.0
      %587 = vmatprep.subr.mxu0 0.0
      %588 = vmatpush1.msra.mxu0 0.0
      %589 = vmatprep.subr.mxu0 0.0
      %590 = vmatpush1.msra.mxu0 0.0
      %591 = vmatprep.subr.mxu0 0.0
      %592 = vmatpush1.msra.mxu0 0.0
      %593 = vmatprep.subr.mxu0 0.0
      %594 = vmatpush1.msra.mxu0 0.0
      %595 = vmatprep.subr.mxu0 0.0
      %596 = vmatpush1.msra.mxu0 0.0
      %597 = vmatprep.mubr.f32.mxu0 0.0
      %v598 = vand.u32 %v80, 4294901760
      %599 = vmatmul.mubr.f32.gmra.mrb[0].mxu0 %v598
      %v600 = vpop.f32.mrb[0].mxu0
      %v601 = vadd.f32 %v491, %v600
      %v602 = vpop.f32.mrb[0].mxu0
      %603 = vdwg.mxu0
      %604 = vmatprep.subr.mxu0 0.0
      %v605 = vand.u32 %v65, 4294901760
      %606 = vmatpush1.msra.mxu0 %v605
      %607 = vmatprep.subr.mxu0 0.0
      %v608 = vand.u32 %v66, 4294901760
      %609 = vmatpush1.msra.mxu0 %v608
      %610 = vmatprep.subr.mxu0 0.0
      %v611 = vand.u32 %v67, 4294901760
      %612 = vmatpush1.msra.mxu0 %v611
      %613 = vmatprep.subr.mxu0 0.0
      %v614 = vand.u32 %v68, 4294901760
      %615 = vmatpush1.msra.mxu0 %v614
      %616 = vmatprep.subr.mxu0 0.0
      %v617 = vand.u32 %v69, 4294901760
      %618 = vmatpush1.msra.mxu0 %v617
      %619 = vmatprep.subr.mxu0 0.0
      %v620 = vand.u32 %v70, 4294901760
      %621 = vmatpush1.msra.mxu0 %v620
      %622 = vmatprep.subr.mxu0 0.0
      %v623 = vand.u32 %v71, 4294901760
      %624 = vmatpush1.msra.mxu0 %v623
      %625 = vmatprep.subr.mxu0 0.0
      %v626 = vand.u32 %v72, 4294901760
      %627 = vmatpush1.msra.mxu0 %v626
      %628 = vmatprep.subr.mxu0 0.0
      %v629 = vand.u32 %v73, 4294901760
      %630 = vmatpush1.msra.mxu0 %v629
      %631 = vmatprep.subr.mxu0 0.0
      %v632 = vand.u32 %v74, 4294901760
      %633 = vmatpush1.msra.mxu0 %v632
      %634 = vmatprep.subr.mxu0 0.0
      %v635 = vand.u32 %v75, 4294901760
      %636 = vmatpush1.msra.mxu0 %v635
      %637 = vmatprep.subr.mxu0 0.0
      %v638 = vand.u32 %v76, 4294901760
      %639 = vmatpush1.msra.mxu0 %v638
      %640 = vmatprep.subr.mxu0 0.0
      %v641 = vand.u32 %v84, 4294901760
      %642 = vmatpush1.msra.mxu0 %v641
      %643 = vmatprep.subr.mxu0 0.0
      %644 = vmatpush1.msra.mxu0 0.0
      %645 = vmatprep.subr.mxu0 0.0
      %646 = vmatpush1.msra.mxu0 0.0
      %647 = vmatprep.subr.mxu0 0.0
      %648 = vmatpush1.msra.mxu0 0.0
      %649 = vmatprep.subr.mxu0 0.0
      %650 = vmatpush1.msra.mxu0 0.0
      %651 = vmatprep.subr.mxu0 0.0
      %652 = vmatpush1.msra.mxu0 0.0
      %653 = vmatprep.subr.mxu0 0.0
      %654 = vmatpush1.msra.mxu0 0.0
      %655 = vmatprep.subr.mxu0 0.0
      %656 = vmatpush1.msra.mxu0 0.0
      %657 = vmatprep.subr.mxu0 0.0
      %658 = vmatpush1.msra.mxu0 0.0
      %659 = vmatprep.subr.mxu0 0.0
      %660 = vmatpush1.msra.mxu0 0.0
      %661 = vmatprep.subr.mxu0 0.0
      %662 = vmatpush1.msra.mxu0 0.0
      %663 = vmatprep.subr.mxu0 0.0
      %664 = vmatpush1.msra.mxu0 0.0
      %665 = vmatprep.subr.mxu0 0.0
      %666 = vmatpush1.msra.mxu0 0.0
      %667 = vmatprep.subr.mxu0 0.0
      %668 = vmatpush1.msra.mxu0 0.0
      %669 = vmatprep.subr.mxu0 0.0
      %670 = vmatpush1.msra.mxu0 0.0
      %671 = vmatprep.subr.mxu0 0.0
      %672 = vmatpush1.msra.mxu0 0.0
      %673 = vmatprep.subr.mxu0 0.0
      %674 = vmatpush1.msra.mxu0 0.0
      %675 = vmatprep.subr.mxu0 0.0
      %676 = vmatpush1.msra.mxu0 0.0
      %677 = vmatprep.subr.mxu0 0.0
      %678 = vmatpush1.msra.mxu0 0.0
      %679 = vmatprep.subr.mxu0 0.0
      %680 = vmatpush1.msra.mxu0 0.0
      %681 = vmatprep.mubr.f32.mxu0 0.0
      %v682 = vand.u32 %v80, 4294901760
      %683 = vmatmul.mubr.f32.gmra.mrb[0].mxu0 %v682
      %v684 = vpop.f32.mrb[0].mxu0
      %v685 = vadd.f32 %v601, %v684
      %v686 = vpop.f32.mrb[0].mxu0
      %687 = vdwg.mxu0
      %s688 = smul.u32 %s13, 4
      %s689 = scalar_lea.vmem [#allocation2], %s688
      %690 = vst [vmem:[%s689] sm:$0xf] %v685
    $region14: #{tpu_custom_call.1} parent=1 // loop_footer
      %s17 = sadd.s32 1, %s13
    $region15: #{tpu_custom_call.1} parent=1 // loop_footer_branch
      %12 = sbr.rel target = $region11
    $region16: #{tpu_custom_call.1} parent=1 // loop_exit
      _
    // Predicated region
    $region17: #{tpu_custom_call.1} parent=1 // pred_check
      _
    $region18: #{tpu_custom_call.1} parent=1 // pred_check_branch
      %692 = sbr.rel (0) target = $region20
    $region19: #{tpu_custom_call.1} parent=1 // pred_region
      %s694 = ssub.s32 128, 128
      %695 = vsyncadd [#allocation3], %s694
      %s696 = sshll.u32 [#allocation2], 4
      %s697 = int_to_ptr.vmem [resolvable:$true] %s696
      %702 = dma.vmem_to_hbm [thread:$0]  %s697, 128, %s2, [#allocation3], 64, 64, 4
    $region20: #{tpu_custom_call.1} parent=1 // pred_fallthru
      _
    // Predicated region
    $region21: #{tpu_custom_call.1} parent=1 // pred_check
      _
    $region22: #{tpu_custom_call.1} parent=1 // pred_check_branch
      %704 = sbr.rel (0) target = $region24
    $region23: #{tpu_custom_call.1} parent=1 // pred_region
      %705 = dma.done [#allocation3], 128
    $region24: #{tpu_custom_call.1} parent=1 // pred_fallthru
      _
    %706 = vsyncpa [#allocation3], 1

</llo_original>
